<compile_context>
chip_gen: v7x
topology: tpu7x:2x2x1
jax: 0.10.0
libtpu: 0.0.40
codegen_flags: <defaults>
</compile_context>

<pallas_src>
import functools

import jax
import jax.numpy as jnp
from jax.experimental import pallas as pl
from jax.experimental.pallas import tpu as pltpu


def _round_up(n, m):
    return ((n + m - 1) // m) * m


def _tensorcores_per_chip():
    """v7x has 2 TensorCores per chip; v5e/v6e have 1.  Defaults to 1."""
    try:
        kind = jax.devices()[0].device_kind.lower()
    except Exception:
        return 1
    return 2 if "v7" in kind else 1


_MAX_TILE_ROWS = 2048  # ~3 KB/row of 128-lane-padded f32 intermediates -> ~6 MiB live


def _pick_block_b(B):
    """Static batch-tile size. Fewer, larger grid steps: the kernel is
    launch/step-overhead bound, not MXU- or VMEM-bound at these layer widths."""
    if _tensorcores_per_chip() >= 2 and B >= 2048:
        # v7x: split 2 ways across the TensorCores only once per-TC work
        # clearly exceeds the per-step fixed cost.
        return min(_round_up(pl.cdiv(B, 2), 8), _MAX_TILE_ROWS)
    # Single-TC chips (v5e/v6e) or small batch: one big tile per grid step.
    return min(B, _MAX_TILE_ROWS)


def actor_kernel(x_ref, w1_ref, b1_ref, w2_ref, b2_ref,
                 w3_ref, b3_ref, w4_ref, b4_ref, out_ref):
    def dense(h, w_ref, b_ref):
        # bf16 MXU operands, f32 accumulation; bias add stays f32 on the VPU.
        return jnp.dot(h.astype(jnp.bfloat16), w_ref[...],
                       preferred_element_type=jnp.float32) + b_ref[...]

    h = jnp.maximum(dense(x_ref[...], w1_ref, b1_ref), 0.0)
    h = jnp.maximum(dense(h, w2_ref, b2_ref), 0.0)
    h = jnp.maximum(dense(h, w3_ref, b3_ref), 0.0)
    logits = dense(h, w4_ref, b4_ref)

    # Row-wise softmax with exact normalization (PPO consumes log-probs /
    # ratios downstream, and the EUP/VPU have plenty of slack here).
    # Any padded tail rows of the last batch tile stay finite thanks to the
    # max subtraction and are dropped by the masked output writeback.
    m = jnp.max(logits, axis=-1, keepdims=True)
    e = jnp.exp(logits - m)
    denom = jnp.sum(e, axis=-1, keepdims=True)
    out_ref[...] = (e / denom).astype(out_ref.dtype)


@functools.partial(jax.jit, static_argnames=("block_b",))
def _actor_forward(x, params, block_b):
    B, state_dim = x.shape
    action_dim = params["w4"].shape[1]
    n_blocks = pl.cdiv(B, block_b)

    # Weights should already be bf16 (prepare_params); the dtype check is a
    # trace-time Python branch, so no convert op is emitted on the hot path.
    def as_bf16(w):
        return w if w.dtype == jnp.bfloat16 else w.astype(jnp.bfloat16)

    w1, w2, w3, w4 = (as_bf16(params[k]) for k in ("w1", "w2", "w3", "w4"))
    b1, b2, b3, b4 = (params[k] for k in ("b1", "b2", "b3", "b4"))

    # Weights/biases use a constant block index -> DMA'd once, then resident
    # in VMEM and reused across all batch tiles.
    def bcast(shape):
        return pl.BlockSpec(shape, lambda i: (0,) * len(shape))

    grid_spec = pltpu.PrefetchScalarGridSpec(
        num_scalar_prefetch=0,
        grid=(n_blocks,),
        in_specs=[
            pl.BlockSpec((block_b, state_dim), lambda i: (i, 0)),  # x (batch-tiled)
            bcast(w1.shape), bcast(b1.shape),
            bcast(w2.shape), bcast(b2.shape),
            bcast(w3.shape), bcast(b3.shape),
            bcast(w4.shape), bcast(b4.shape),
        ],
        out_specs=pl.BlockSpec((block_b, action_dim), lambda i: (i, 0)),
    )

    return pl.pallas_call(
        actor_kernel,
        out_shape=jax.ShapeDtypeStruct((B, action_dim), jnp.float32),
        grid_spec=grid_spec,
        compiler_params=pltpu.CompilerParams(
            dimension_semantics=("parallel",),
            vmem_limit_bytes=32 * 1024 * 1024),
    )(x, w1, b1, w2, b2, w3, b3, w4, b4)


def actor_forward(x, params, block_b=None):
    """x: (B, state_dim) f32. params: bf16 (in,out) weights, f32 (1,out) biases."""
    if block_b is None:
        block_b = _pick_block_b(x.shape[0])
    return _actor_forward(x, params, block_b)


def prepare_params(params):
    """One-time cast of weights to bf16 (MXU operand dtype). Call once at init;
    keep the f32 masters separately if you also train."""
    prepped = dict(params)
    for name in ("w1", "w2", "w3", "w4"):
        prepped[name] = params[name].astype(jnp.bfloat16)
    return prepped


def init_params(key, state_dim, action_dim):
    """Deterministic init mimicking nn.Linear's uniform(-1/sqrt(fan_in), 1/sqrt(fan_in))."""
    dims = [state_dim, 128, 64, 32, action_dim]
    params = {}
    for li in range(4):
        fan_in, fan_out = dims[li], dims[li + 1]
        key, kw, kb = jax.random.split(key, 3)
        bound = 1.0 / jnp.sqrt(fan_in)
        params[f"w{li+1}"] = jax.random.uniform(
            kw, (fan_in, fan_out), jnp.float32, -bound, bound)
        params[f"b{li+1}"] = jax.random.uniform(
            kb, (1, fan_out), jnp.float32, -bound, bound)
    return params


def actor_ref(x, params_f32):
    """Pure-JAX reference matching the kernel's bf16-operand / f32-accumulate matmuls."""
    def dense(h, w, b):
        return jnp.dot(h.astype(jnp.bfloat16), w.astype(jnp.bfloat16),
                       preferred_element_type=jnp.float32) + b

    h = jnp.maximum(dense(x, params_f32["w1"], params_f32["b1"]), 0.0)
    h = jnp.maximum(dense(h, params_f32["w2"], params_f32["b2"]), 0.0)
    h = jnp.maximum(dense(h, params_f32["w3"], params_f32["b3"]), 0.0)
    return jax.nn.softmax(dense(h, params_f32["w4"], params_f32["b4"]), axis=-1)


if __name__ == "__main__":
    key = jax.random.PRNGKey(0)
    state_dim, action_dim, batch = 32, 8, 128

    key, kx = jax.random.split(key)
    x = jax.random.normal(kx, (batch, state_dim), jnp.float32)
    params_f32 = init_params(key, state_dim, action_dim)
    params = prepare_params(params_f32)  # one-time bf16 weight cast (hoisted)

    out = jax.block_until_ready(actor_forward(x, params))

    ref = actor_ref(x, params_f32)
    assert out.shape == (batch, action_dim)
    assert bool(jnp.all(jnp.isfinite(out)))
    # Exact softmax normalization -> rows sum to 1 within f32 rounding.
    assert jnp.allclose(jnp.sum(out, axis=-1), 1.0, atol=1e-5)
    # bf16 MXU operands perturb logits slightly; tolerances reflect that.
    assert jnp.allclose(out, ref, atol=2e-3, rtol=2e-3)

    print("KERNEL_OK")
</pallas_src>

<mosaic_0001>
module attributes {stable_mosaic.version = 11 : i64} {
  func.func @actor_kernel(%arg0: i32, %arg1: memref<128x32xf32, #tpu.memory_space<vmem>>, %arg2: memref<32x128xbf16, #tpu.memory_space<vmem>>, %arg3: memref<1x128xf32, #tpu.memory_space<vmem>>, %arg4: memref<128x64xbf16, #tpu.memory_space<vmem>>, %arg5: memref<1x64xf32, #tpu.memory_space<vmem>>, %arg6: memref<64x32xbf16, #tpu.memory_space<vmem>>, %arg7: memref<1x32xf32, #tpu.memory_space<vmem>>, %arg8: memref<32x8xbf16, #tpu.memory_space<vmem>>, %arg9: memref<1x8xf32, #tpu.memory_space<vmem>>, %arg10: memref<128x8xf32, #tpu.memory_space<vmem>>) attributes {dimension_semantics = [#tpu.dimension_semantics<parallel>], iteration_bounds = array<i64: 1>, scalar_prefetch = 0 : i64, scratch_operands = 0 : i64, tpu.core_type = #tpu.core_type<tc>, window_params = [{transform_indices = @transform_0, window_bounds = array<i64: 128, 32>}, {pipeline_mode = #tpu.pipeline_mode<synchronous>, transform_indices = @transform_1, window_bounds = array<i64: 32, 128>}, {pipeline_mode = #tpu.pipeline_mode<synchronous>, transform_indices = @transform_2, window_bounds = array<i64: 1, 128>}, {pipeline_mode = #tpu.pipeline_mode<synchronous>, transform_indices = @transform_3, window_bounds = array<i64: 128, 64>}, {pipeline_mode = #tpu.pipeline_mode<synchronous>, transform_indices = @transform_4, window_bounds = array<i64: 1, 64>}, {pipeline_mode = #tpu.pipeline_mode<synchronous>, transform_indices = @transform_5, window_bounds = array<i64: 64, 32>}, {pipeline_mode = #tpu.pipeline_mode<synchronous>, transform_indices = @transform_6, window_bounds = array<i64: 1, 32>}, {pipeline_mode = #tpu.pipeline_mode<synchronous>, transform_indices = @transform_7, window_bounds = array<i64: 32, 8>}, {pipeline_mode = #tpu.pipeline_mode<synchronous>, transform_indices = @transform_8, window_bounds = array<i64: 1, 8>}, {transform_indices = @transform_9, window_bounds = array<i64: 128, 8>}]} {
    %c0 = arith.constant 0 : index
    %c0_0 = arith.constant 0 : index
    %0 = vector.load %arg1[%c0, %c0_0] : memref<128x32xf32, #tpu.memory_space<vmem>>, vector<128x32xf32>
    %1 = arith.truncf %0 : vector<128x32xf32> to vector<128x32xbf16>
    %c0_1 = arith.constant 0 : index
    %c0_2 = arith.constant 0 : index
    %2 = vector.load %arg2[%c0_1, %c0_2] : memref<32x128xbf16, #tpu.memory_space<vmem>>, vector<32x128xbf16>
    %cst = arith.constant dense<0.000000e+00> : vector<128x128xf32>
    %3 = tpu.matmul %1, %2, %cst {dimension_numbers = #tpu.dot_dimension_numbers<[1], [0], [0], [1], [0, 0, 1, 1], [], []>} : vector<128x32xbf16>, vector<32x128xbf16>, vector<128x128xf32> -> vector<128x128xf32>
    %c0_3 = arith.constant 0 : index
    %c0_4 = arith.constant 0 : index
    %4 = vector.load %arg3[%c0_3, %c0_4] : memref<1x128xf32, #tpu.memory_space<vmem>>, vector<1x128xf32>
    %5 = vector.broadcast %4 : vector<1x128xf32> to vector<128x128xf32>
    %6 = arith.addf %3, %5 : vector<128x128xf32>
    %cst_5 = arith.constant 0.000000e+00 : f32
    %7 = vector.broadcast %cst_5 : f32 to vector<128x128xf32>
    %8 = arith.maximumf %6, %7 : vector<128x128xf32>
    %9 = arith.truncf %8 : vector<128x128xf32> to vector<128x128xbf16>
    %c0_6 = arith.constant 0 : index
    %c0_7 = arith.constant 0 : index
    %10 = vector.load %arg4[%c0_6, %c0_7] : memref<128x64xbf16, #tpu.memory_space<vmem>>, vector<128x64xbf16>
    %cst_8 = arith.constant dense<0.000000e+00> : vector<128x64xf32>
    %11 = tpu.matmul %9, %10, %cst_8 {dimension_numbers = #tpu.dot_dimension_numbers<[1], [0], [0], [1], [0, 0, 1, 1], [], []>} : vector<128x128xbf16>, vector<128x64xbf16>, vector<128x64xf32> -> vector<128x64xf32>
    %c0_9 = arith.constant 0 : index
    %c0_10 = arith.constant 0 : index
    %12 = vector.load %arg5[%c0_9, %c0_10] : memref<1x64xf32, #tpu.memory_space<vmem>>, vector<1x64xf32>
    %13 = vector.broadcast %12 : vector<1x64xf32> to vector<128x64xf32>
    %14 = arith.addf %11, %13 : vector<128x64xf32>
    %cst_11 = arith.constant 0.000000e+00 : f32
    %15 = vector.broadcast %cst_11 : f32 to vector<128x64xf32>
    %16 = arith.maximumf %14, %15 : vector<128x64xf32>
    %17 = arith.truncf %16 : vector<128x64xf32> to vector<128x64xbf16>
    %c0_12 = arith.constant 0 : index
    %c0_13 = arith.constant 0 : index
    %18 = vector.load %arg6[%c0_12, %c0_13] : memref<64x32xbf16, #tpu.memory_space<vmem>>, vector<64x32xbf16>
    %cst_14 = arith.constant dense<0.000000e+00> : vector<128x32xf32>
    %19 = tpu.matmul %17, %18, %cst_14 {dimension_numbers = #tpu.dot_dimension_numbers<[1], [0], [0], [1], [0, 0, 1, 1], [], []>} : vector<128x64xbf16>, vector<64x32xbf16>, vector<128x32xf32> -> vector<128x32xf32>
    %c0_15 = arith.constant 0 : index
    %c0_16 = arith.constant 0 : index
    %20 = vector.load %arg7[%c0_15, %c0_16] : memref<1x32xf32, #tpu.memory_space<vmem>>, vector<1x32xf32>
    %21 = vector.broadcast %20 : vector<1x32xf32> to vector<128x32xf32>
    %22 = arith.addf %19, %21 : vector<128x32xf32>
    %cst_17 = arith.constant 0.000000e+00 : f32
    %23 = vector.broadcast %cst_17 : f32 to vector<128x32xf32>
    %24 = arith.maximumf %22, %23 : vector<128x32xf32>
    %25 = arith.truncf %24 : vector<128x32xf32> to vector<128x32xbf16>
    %c0_18 = arith.constant 0 : index
    %c0_19 = arith.constant 0 : index
    %26 = vector.load %arg8[%c0_18, %c0_19] : memref<32x8xbf16, #tpu.memory_space<vmem>>, vector<32x8xbf16>
    %cst_20 = arith.constant dense<0.000000e+00> : vector<128x8xf32>
    %27 = tpu.matmul %25, %26, %cst_20 {dimension_numbers = #tpu.dot_dimension_numbers<[1], [0], [0], [1], [0, 0, 1, 1], [], []>} : vector<128x32xbf16>, vector<32x8xbf16>, vector<128x8xf32> -> vector<128x8xf32>
    %c0_21 = arith.constant 0 : index
    %c0_22 = arith.constant 0 : index
    %28 = vector.load %arg9[%c0_21, %c0_22] : memref<1x8xf32, #tpu.memory_space<vmem>>, vector<1x8xf32>
    %29 = vector.broadcast %28 : vector<1x8xf32> to vector<128x8xf32>
    %30 = arith.addf %27, %29 : vector<128x8xf32>
    %cst_23 = arith.constant dense<0xFF800000> : vector<128xf32>
    %31 = vector.multi_reduction <maximumf>, %30, %cst_23 [1] : vector<128x8xf32> to vector<128xf32>
    %32 = vector.shape_cast %31 : vector<128xf32> to vector<128x1xf32>
    %33 = vector.broadcast %32 : vector<128x1xf32> to vector<128x8xf32>
    %34 = arith.subf %30, %33 : vector<128x8xf32>
    %35 = math.exp %34 : vector<128x8xf32>
    %cst_24 = arith.constant dense<0.000000e+00> : vector<128xf32>
    %36 = vector.multi_reduction <add>, %35, %cst_24 [1] : vector<128x8xf32> to vector<128xf32>
    %37 = vector.shape_cast %36 : vector<128xf32> to vector<128x1xf32>
    %38 = vector.broadcast %37 : vector<128x1xf32> to vector<128x8xf32>
    %39 = arith.divf %35, %38 : vector<128x8xf32>
    %c0_25 = arith.constant 0 : index
    %c0_26 = arith.constant 0 : index
    %40 = vector.load %arg10[%c0_25, %c0_26] : memref<128x8xf32, #tpu.memory_space<vmem>>, vector<128x8xf32>
    tpu.vector_store %arg10[%c0_25, %c0_26], %39 {strides = array<i32>} : memref<128x8xf32, #tpu.memory_space<vmem>>, vector<128x8xf32>,
    return
  }
  func.func @transform_0(%arg0: i32) -> (i32, i32) {
    %c0_i32 = arith.constant 0 : i32
    %c0_i32_0 = arith.constant 0 : i32
    return %arg0, %c0_i32 : i32, i32
  }
  func.func @transform_1(%arg0: i32) -> (i32, i32) {
    %c0_i32 = arith.constant 0 : i32
    %c0_i32_0 = arith.constant 0 : i32
    %c0_i32_1 = arith.constant 0 : i32
    return %c0_i32, %c0_i32_0 : i32, i32
  }
  func.func @transform_2(%arg0: i32) -> (i32, i32) {
    %c0_i32 = arith.constant 0 : i32
    %c0_i32_0 = arith.constant 0 : i32
    %c0_i32_1 = arith.constant 0 : i32
    return %c0_i32, %c0_i32_0 : i32, i32
  }
  func.func @transform_3(%arg0: i32) -> (i32, i32) {
    %c0_i32 = arith.constant 0 : i32
    %c0_i32_0 = arith.constant 0 : i32
    %c0_i32_1 = arith.constant 0 : i32
    return %c0_i32, %c0_i32_0 : i32, i32
  }
  func.func @transform_4(%arg0: i32) -> (i32, i32) {
    %c0_i32 = arith.constant 0 : i32
    %c0_i32_0 = arith.constant 0 : i32
    %c0_i32_1 = arith.constant 0 : i32
    return %c0_i32, %c0_i32_0 : i32, i32
  }
  func.func @transform_5(%arg0: i32) -> (i32, i32) {
    %c0_i32 = arith.constant 0 : i32
    %c0_i32_0 = arith.constant 0 : i32
    %c0_i32_1 = arith.constant 0 : i32
    return %c0_i32, %c0_i32_0 : i32, i32
  }
  func.func @transform_6(%arg0: i32) -> (i32, i32) {
    %c0_i32 = arith.constant 0 : i32
    %c0_i32_0 = arith.constant 0 : i32
    %c0_i32_1 = arith.constant 0 : i32
    return %c0_i32, %c0_i32_0 : i32, i32
  }
  func.func @transform_7(%arg0: i32) -> (i32, i32) {
    %c0_i32 = arith.constant 0 : i32
    %c0_i32_0 = arith.constant 0 : i32
    %c0_i32_1 = arith.constant 0 : i32
    return %c0_i32, %c0_i32_0 : i32, i32
  }
  func.func @transform_8(%arg0: i32) -> (i32, i32) {
    %c0_i32 = arith.constant 0 : i32
    %c0_i32_0 = arith.constant 0 : i32
    %c0_i32_1 = arith.constant 0 : i32
    return %c0_i32, %c0_i32_0 : i32, i32
  }
  func.func @transform_9(%arg0: i32) -> (i32, i32) {
    %c0_i32 = arith.constant 0 : i32
    %c0_i32_0 = arith.constant 0 : i32
    return %arg0, %c0_i32 : i32, i32
  }
}

</mosaic_0001>

<llo_original>
// kernel: _actor_forward.1
$region0: #{_actor_forward.1}
  #allocation0 [shape = 'u32[]', space=smem, size = 0x4, offset = 0x4, fixed_abs, tag = 'smem constant byte address 0x4 - core index']
  #allocation1 [shape = 'u32[144,128]{1,0:T(1,128)}', space=vmem, size = 0x12000, scoped, tag = 'internal scratch']
  %s0 = inlined_call_operand.vmem [shape: f32[128,32], index: 0, kind: input, shape index: {}]
  %s1 = inlined_call_operand.vmem [shape: bf16[32,128], index: 1, kind: input, shape index: {}]
  %s2 = inlined_call_operand.vmem [shape: f32[1,128], index: 2, kind: input, shape index: {}]
  %s3 = inlined_call_operand.vmem [shape: bf16[128,64], index: 3, kind: input, shape index: {}]
  %s4 = inlined_call_operand.vmem [shape: f32[1,64], index: 4, kind: input, shape index: {}]
  %s5 = inlined_call_operand.vmem [shape: bf16[64,32], index: 5, kind: input, shape index: {}]
  %s6 = inlined_call_operand.vmem [shape: f32[1,32], index: 6, kind: input, shape index: {}]
  %s7 = inlined_call_operand.vmem [shape: bf16[32,8], index: 7, kind: input, shape index: {}]
  %s8 = inlined_call_operand.vmem [shape: f32[1,8], index: 8, kind: input, shape index: {}]
  %s9 = inlined_call_operand.vmem [shape: f32[128,8], index: 9, kind: output, shape index: {}]
  %s10 = sld [smem:[#allocation0]]
  $region46: #{_actor_forward.1} parent=0
    _
  %s12 = ssub.s32 1, %s10
  %s13 = scalar_select 0, %s12, %s10
  // Predicated region
  $region2: #{_actor_forward.1} parent=0 // pred_check
    _
  $region3: #{_actor_forward.1} parent=0 // pred_check_branch
    %15 = sbr.rel (0) target = $region5
  $region4: #{_actor_forward.1} parent=0 // pred_region
    _
  $region5: #{_actor_forward.1} parent=0 // pred_fallthru
    _
  // Predicated region
  $region6: #{_actor_forward.1} parent=0 // pred_check
    _
  $region7: #{_actor_forward.1} parent=0 // pred_check_branch
    %17 = sbr.rel (0) target = $region9
  $region8: #{_actor_forward.1} parent=0 // pred_region
    _
  $region9: #{_actor_forward.1} parent=0 // pred_fallthru
    _
  // Predicated region
  $region10: #{_actor_forward.1} parent=0 // pred_check
    _
  $region11: #{_actor_forward.1} parent=0 // pred_check_branch
    %19 = sbr.rel (0) target = $region13
  $region12: #{_actor_forward.1} parent=0 // pred_region
    _
  $region13: #{_actor_forward.1} parent=0 // pred_fallthru
    _
  // Predicated region
  $region14: #{_actor_forward.1} parent=0 // pred_check
    _
  $region15: #{_actor_forward.1} parent=0 // pred_check_branch
    %21 = sbr.rel (0) target = $region17
  $region16: #{_actor_forward.1} parent=0 // pred_region
    _
  $region17: #{_actor_forward.1} parent=0 // pred_fallthru
    _
  // Predicated region
  $region18: #{_actor_forward.1} parent=0 // pred_check
    _
  $region19: #{_actor_forward.1} parent=0 // pred_check_branch
    %23 = sbr.rel (0) target = $region21
  $region20: #{_actor_forward.1} parent=0 // pred_region
    _
  $region21: #{_actor_forward.1} parent=0 // pred_fallthru
    _
  // Predicated region
  $region22: #{_actor_forward.1} parent=0 // pred_check
    _
  $region23: #{_actor_forward.1} parent=0 // pred_check_branch
    %25 = sbr.rel (0) target = $region25
  $region24: #{_actor_forward.1} parent=0 // pred_region
    _
  $region25: #{_actor_forward.1} parent=0 // pred_fallthru
    _
  // Predicated region
  $region26: #{_actor_forward.1} parent=0 // pred_check
    _
  $region27: #{_actor_forward.1} parent=0 // pred_check_branch
    %27 = sbr.rel (0) target = $region29
  $region28: #{_actor_forward.1} parent=0 // pred_region
    _
  $region29: #{_actor_forward.1} parent=0 // pred_fallthru
    _
  // Predicated region
  $region30: #{_actor_forward.1} parent=0 // pred_check
    _
  $region31: #{_actor_forward.1} parent=0 // pred_check_branch
    %29 = sbr.rel (0) target = $region33
  $region32: #{_actor_forward.1} parent=0 // pred_region
    _
  $region33: #{_actor_forward.1} parent=0 // pred_fallthru
    _
  // Predicated region
  $region34: #{_actor_forward.1} parent=0 // pred_check
    _
  $region35: #{_actor_forward.1} parent=0 // pred_check_branch
    %31 = sbr.rel (0) target = $region37
  $region36: #{_actor_forward.1} parent=0 // pred_region
    _
  $region37: #{_actor_forward.1} parent=0 // pred_fallthru
    _
  %v33 = vld [vmem:[%s0] sm:$0xff]
  %v34 = vld [vmem:[%s0 + $0x8] sm:$0xff]
  %v35 = vld [vmem:[%s0 + $0x10] sm:$0xff]
  %v36 = vld [vmem:[%s0 + $0x18] sm:$0xff]
  %v37 = vld [vmem:[%s0 + $0x20] sm:$0xff]
  %v38 = vld [vmem:[%s0 + $0x28] sm:$0xff]
  %v39 = vld [vmem:[%s0 + $0x30] sm:$0xff]
  %v40 = vld [vmem:[%s0 + $0x38] sm:$0xff]
  %v41 = vld [vmem:[%s0 + $0x40] sm:$0xff]
  %v42 = vld [vmem:[%s0 + $0x48] sm:$0xff]
  %v43 = vld [vmem:[%s0 + $0x50] sm:$0xff]
  %v44 = vld [vmem:[%s0 + $0x58] sm:$0xff]
  %v45 = vld [vmem:[%s0 + $0x60] sm:$0xff]
  %v46 = vld [vmem:[%s0 + $0x68] sm:$0xff]
  %v47 = vld [vmem:[%s0 + $0x70] sm:$0xff]
  %v48 = vld [vmem:[%s0 + $0x78] sm:$0xff]
  %v49 = vpack.c.bf16 %v34, %v33
  %v50 = vpack.c.bf16 %v36, %v35
  %v51 = vpack.c.bf16 %v38, %v37
  %v52 = vpack.c.bf16 %v40, %v39
  %v53 = vpack.c.bf16 %v42, %v41
  %v54 = vpack.c.bf16 %v44, %v43
  %v55 = vpack.c.bf16 %v46, %v45
  %v56 = vpack.c.bf16 %v48, %v47
  %v57 = vld [vmem:[%s1] sm:$0xf]
  %v58 = vld [vmem:[%s1 + $0x4] sm:$0xf]
  %v59 = vld [vmem:[%s1 + $0x8] sm:$0xf]
  %v60 = vld [vmem:[%s1 + $0xc] sm:$0xf]
  %v61 = vld [vmem:[%s2] sm:$0x1]
  %v63 = vlaneseq
  %v64 = vshrl.u32 %v63, 7
  %v65 = vsub.s32 0, %v64
  %v66 = vrot.slane %v61, %v65
  %v72 = vunpack.c.l.b16 %v57
  %v73 = vunpack.c.l.b16 %v58
  %v74 = vunpack.c.l.b16 %v59
  %v75 = vunpack.c.l.b16 %v60
  %v76 = vpack.c.b16 %v73, %v72
  %v77 = vpack.c.b16 %v75, %v74
  %vm80 = vcmask 261120
  %v82 = vsel %vm80, %v49, 0
  %v85 = vsel %vm80, %v50, 0
  %v88 = vsel %vm80, %v51, 0
  %v91 = vsel %vm80, %v52, 0
  %v94 = vsel %vm80, %v53, 0
  %v97 = vsel %vm80, %v54, 0
  %v100 = vsel %vm80, %v55, 0
  %v103 = vsel %vm80, %v56, 0
  %105 = vmatprep.subr.bf16.mxu0 0
  %106 = vmatpush1.bf16.msra.mxu0 %v76
  %107 = vmatprep.subr.bf16.mxu0 0
  %108 = vmatpush1.bf16.msra.mxu0 %v77
  %109 = vmatprep.subr.bf16.mxu0 0
  %110 = vmatpush1.bf16.msra.mxu0 0
  %111 = vmatprep.subr.bf16.mxu0 0
  %112 = vmatpush1.bf16.msra.mxu0 0
  %113 = vmatprep.subr.bf16.mxu0 0
  %114 = vmatpush1.bf16.msra.mxu0 0
  %115 = vmatprep.subr.bf16.mxu0 0
  %116 = vmatpush1.bf16.msra.mxu0 0
  %117 = vmatprep.subr.bf16.mxu0 0
  %118 = vmatpush1.bf16.msra.mxu0 0
  %119 = vmatprep.subr.bf16.mxu0 0
  %120 = vmatpush1.bf16.msra.mxu0 0
  %121 = vmatprep.subr.bf16.mxu0 0
  %122 = vmatpush1.bf16.msra.mxu0 0
  %123 = vmatprep.subr.bf16.mxu0 0
  %124 = vmatpush1.bf16.msra.mxu0 0
  %125 = vmatprep.subr.bf16.mxu0 0
  %126 = vmatpush1.bf16.msra.mxu0 0
  %127 = vmatprep.subr.bf16.mxu0 0
  %128 = vmatpush1.bf16.msra.mxu0 0
  %129 = vmatprep.subr.bf16.mxu0 0
  %130 = vmatpush1.bf16.msra.mxu0 0
  %131 = vmatprep.subr.bf16.mxu0 0
  %132 = vmatpush1.bf16.msra.mxu0 0
  %133 = vmatprep.subr.bf16.mxu0 0
  %134 = vmatpush1.bf16.msra.mxu0 0
  %135 = vmatprep.subr.bf16.mxu0 0
  %136 = vmatpush1.bf16.msra.mxu0 0
  %137 = vmatprep.mubr.bf16.mxu0 0
  %138 = vmatmul.mubr.bf16.gmra.mrb[0].mxu0 %v82
  %v139 = vpop.f32.mrb[0].mxu0
  %v140 = vadd.f32 %v66, %v139
  %v141 = vpop.f32.mrb[0].mxu0
  %v142 = vpop.f32.mrb[0].mxu0
  %v143 = vadd.f32 %v66, %v142
  %v144 = vpop.f32.mrb[0].mxu0
  %145 = vmatprep.mubr.bf16.mxu0 0
  %146 = vmatmul.mubr.bf16.gmra.mrb[0].mxu0 %v85
  %v147 = vpop.f32.mrb[0].mxu0
  %v148 = vadd.f32 %v66, %v147
  %v149 = vpop.f32.mrb[0].mxu0
  %v150 = vpop.f32.mrb[0].mxu0
  %v151 = vadd.f32 %v66, %v150
  %v152 = vpop.f32.mrb[0].mxu0
  %153 = vmatprep.mubr.bf16.mxu0 0
  %154 = vmatmul.mubr.bf16.gmra.mrb[0].mxu0 %v88
  %v155 = vpop.f32.mrb[0].mxu0
  %v156 = vadd.f32 %v66, %v155
  %v157 = vpop.f32.mrb[0].mxu0
  %v158 = vpop.f32.mrb[0].mxu0
  %v159 = vadd.f32 %v66, %v158
  %v160 = vpop.f32.mrb[0].mxu0
  %161 = vmatprep.mubr.bf16.mxu0 0
  %162 = vmatmul.mubr.bf16.gmra.mrb[0].mxu0 %v91
  %v163 = vpop.f32.mrb[0].mxu0
  %v164 = vadd.f32 %v66, %v163
  %v165 = vpop.f32.mrb[0].mxu0
  %v166 = vpop.f32.mrb[0].mxu0
  %v167 = vadd.f32 %v66, %v166
  %v168 = vpop.f32.mrb[0].mxu0
  %169 = vmatprep.mubr.bf16.mxu0 0
  %170 = vmatmul.mubr.bf16.gmra.mrb[0].mxu0 %v94
  %v171 = vpop.f32.mrb[0].mxu0
  %v172 = vadd.f32 %v66, %v171
  %v173 = vpop.f32.mrb[0].mxu0
  %v174 = vpop.f32.mrb[0].mxu0
  %v175 = vadd.f32 %v66, %v174
  %v176 = vpop.f32.mrb[0].mxu0
  %177 = vmatprep.mubr.bf16.mxu0 0
  %178 = vmatmul.mubr.bf16.gmra.mrb[0].mxu0 %v97
  %v179 = vpop.f32.mrb[0].mxu0
  %v180 = vadd.f32 %v66, %v179
  %v181 = vpop.f32.mrb[0].mxu0
  %v182 = vpop.f32.mrb[0].mxu0
  %v183 = vadd.f32 %v66, %v182
  %v184 = vpop.f32.mrb[0].mxu0
  %185 = vmatprep.mubr.bf16.mxu0 0
  %186 = vmatmul.mubr.bf16.gmra.mrb[0].mxu0 %v100
  %v187 = vpop.f32.mrb[0].mxu0
  %v188 = vadd.f32 %v66, %v187
  %v189 = vpop.f32.mrb[0].mxu0
  %v190 = vpop.f32.mrb[0].mxu0
  %v191 = vadd.f32 %v66, %v190
  %v192 = vpop.f32.mrb[0].mxu0
  %193 = vmatprep.mubr.bf16.mxu0 0
  %194 = vmatmul.mubr.bf16.gmra.mrb[0].mxu0 %v103
  %v195 = vpop.f32.mrb[0].mxu0
  %v196 = vadd.f32 %v66, %v195
  %v197 = vpop.f32.mrb[0].mxu0
  %v198 = vpop.f32.mrb[0].mxu0
  %v199 = vadd.f32 %v66, %v198
  %v200 = vpop.f32.mrb[0].mxu0
  %201 = vdwg.mxu0
  %v202 = vmax.f32 %v140, 0.0
  %v203 = vmax.f32 %v143, 0.0
  %v204 = vmax.f32 %v148, 0.0
  %v205 = vmax.f32 %v151, 0.0
  %v206 = vmax.f32 %v156, 0.0
  %v207 = vmax.f32 %v159, 0.0
  %v208 = vmax.f32 %v164, 0.0
  %v209 = vmax.f32 %v167, 0.0
  %v210 = vmax.f32 %v172, 0.0
  %v211 = vmax.f32 %v175, 0.0
  %v212 = vmax.f32 %v180, 0.0
  %v213 = vmax.f32 %v183, 0.0
  %v214 = vmax.f32 %v188, 0.0
  %v215 = vmax.f32 %v191, 0.0
  %v216 = vmax.f32 %v196, 0.0
  %v217 = vmax.f32 %v199, 0.0
  %v218 = vpack.c.bf16 %v203, %v202
  %v219 = vpack.c.bf16 %v205, %v204
  %v220 = vpack.c.bf16 %v207, %v206
  %v221 = vpack.c.bf16 %v209, %v208
  %v222 = vpack.c.bf16 %v211, %v210
  %v223 = vpack.c.bf16 %v213, %v212
  %v224 = vpack.c.bf16 %v215, %v214
  %v225 = vpack.c.bf16 %v217, %v216
  %v226 = vld [vmem:[%s3] sm:$0xf]
  %v227 = vld [vmem:[%s3 + $0x4] sm:$0xf]
  %v228 = vld [vmem:[%s3 + $0x8] sm:$0xf]
  %v229 = vld [vmem:[%s3 + $0xc] sm:$0xf]
  %v230 = vld [vmem:[%s3 + $0x10] sm:$0xf]
  %v231 = vld [vmem:[%s3 + $0x14] sm:$0xf]
  %v232 = vld [vmem:[%s3 + $0x18] sm:$0xf]
  %v233 = vld [vmem:[%s3 + $0x1c] sm:$0xf]
  %v234 = vld [vmem:[%s3 + $0x20] sm:$0xf]
  %v235 = vld [vmem:[%s3 + $0x24] sm:$0xf]
  %v236 = vld [vmem:[%s3 + $0x28] sm:$0xf]
  %v237 = vld [vmem:[%s3 + $0x2c] sm:$0xf]
  %v238 = vld [vmem:[%s3 + $0x30] sm:$0xf]
  %v239 = vld [vmem:[%s3 + $0x34] sm:$0xf]
  %v240 = vld [vmem:[%s3 + $0x38] sm:$0xf]
  %v241 = vld [vmem:[%s3 + $0x3c] sm:$0xf]
  %v242 = vld [vmem:[%s4] sm:$0x1]
  %v244 = vlaneseq
  %v245 = vshrl.u32 %v244, 7
  %v246 = vsub.s32 0, %v245
  %v247 = vrot.slane %v242, %v246
  %v265 = vunpack.c.l.b16 %v226
  %v266 = vunpack.c.l.b16 %v227
  %v267 = vunpack.c.l.b16 %v228
  %v268 = vunpack.c.l.b16 %v229
  %v269 = vunpack.c.l.b16 %v230
  %v270 = vunpack.c.l.b16 %v231
  %v271 = vunpack.c.l.b16 %v232
  %v272 = vunpack.c.l.b16 %v233
  %v273 = vunpack.c.l.b16 %v234
  %v274 = vunpack.c.l.b16 %v235
  %v275 = vunpack.c.l.b16 %v236
  %v276 = vunpack.c.l.b16 %v237
  %v277 = vunpack.c.l.b16 %v238
  %v278 = vunpack.c.l.b16 %v239
  %v279 = vunpack.c.l.b16 %v240
  %v280 = vunpack.c.l.b16 %v241
  %v281 = vpack.c.b16 %v266, %v265
  %v282 = vpack.c.b16 %v268, %v267
  %v283 = vpack.c.b16 %v270, %v269
  %v284 = vpack.c.b16 %v272, %v271
  %v285 = vpack.c.b16 %v274, %v273
  %v286 = vpack.c.b16 %v276, %v275
  %v287 = vpack.c.b16 %v278, %v277
  %v288 = vpack.c.b16 %v280, %v279
  %297 = vmatprep.subr.bf16.mxu0 0
  %298 = vmatpush1.bf16.msra.mxu0 %v281
  %299 = vmatprep.subr.bf16.mxu0 0
  %300 = vmatpush1.bf16.msra.mxu0 %v282
  %301 = vmatprep.subr.bf16.mxu0 0
  %302 = vmatpush1.bf16.msra.mxu0 %v283
  %303 = vmatprep.subr.bf16.mxu0 0
  %304 = vmatpush1.bf16.msra.mxu0 %v284
  %305 = vmatprep.subr.bf16.mxu0 0
  %306 = vmatpush1.bf16.msra.mxu0 %v285
  %307 = vmatprep.subr.bf16.mxu0 0
  %308 = vmatpush1.bf16.msra.mxu0 %v286
  %309 = vmatprep.subr.bf16.mxu0 0
  %310 = vmatpush1.bf16.msra.mxu0 %v287
  %311 = vmatprep.subr.bf16.mxu0 0
  %312 = vmatpush1.bf16.msra.mxu0 %v288
  %313 = vmatprep.subr.bf16.mxu0 0
  %314 = vmatpush1.bf16.msra.mxu0 0
  %315 = vmatprep.subr.bf16.mxu0 0
  %316 = vmatpush1.bf16.msra.mxu0 0
  %317 = vmatprep.subr.bf16.mxu0 0
  %318 = vmatpush1.bf16.msra.mxu0 0
  %319 = vmatprep.subr.bf16.mxu0 0
  %320 = vmatpush1.bf16.msra.mxu0 0
  %321 = vmatprep.subr.bf16.mxu0 0
  %322 = vmatpush1.bf16.msra.mxu0 0
  %323 = vmatprep.subr.bf16.mxu0 0
  %324 = vmatpush1.bf16.msra.mxu0 0
  %325 = vmatprep.subr.bf16.mxu0 0
  %326 = vmatpush1.bf16.msra.mxu0 0
  %327 = vmatprep.subr.bf16.mxu0 0
  %328 = vmatpush1.bf16.msra.mxu0 0
  %329 = vmatprep.mubr.bf16.mxu0 0
  %330 = vmatmul.mubr.bf16.gmra.mrb[0].mxu0 %v218
  %v331 = vpop.f32.mrb[0].mxu0
  %v332 = vadd.f32 %v247, %v331
  %v333 = vpop.f32.mrb[0].mxu0
  %v334 = vpop.f32.mrb[0].mxu0
  %v335 = vadd.f32 %v247, %v334
  %v336 = vpop.f32.mrb[0].mxu0
  %337 = vmatprep.mubr.bf16.mxu0 0
  %338 = vmatmul.mubr.bf16.gmra.mrb[0].mxu0 %v219
  %v339 = vpop.f32.mrb[0].mxu0
  %v340 = vadd.f32 %v247, %v339
  %v341 = vpop.f32.mrb[0].mxu0
  %v342 = vpop.f32.mrb[0].mxu0
  %v343 = vadd.f32 %v247, %v342
  %v344 = vpop.f32.mrb[0].mxu0
  %345 = vmatprep.mubr.bf16.mxu0 0
  %346 = vmatmul.mubr.bf16.gmra.mrb[0].mxu0 %v220
  %v347 = vpop.f32.mrb[0].mxu0
  %v348 = vadd.f32 %v247, %v347
  %v349 = vpop.f32.mrb[0].mxu0
  %v350 = vpop.f32.mrb[0].mxu0
  %v351 = vadd.f32 %v247, %v350
  %v352 = vpop.f32.mrb[0].mxu0
  %353 = vmatprep.mubr.bf16.mxu0 0
  %354 = vmatmul.mubr.bf16.gmra.mrb[0].mxu0 %v221
  %v355 = vpop.f32.mrb[0].mxu0
  %v356 = vadd.f32 %v247, %v355
  %v357 = vpop.f32.mrb[0].mxu0
  %v358 = vpop.f32.mrb[0].mxu0
  %v359 = vadd.f32 %v247, %v358
  %v360 = vpop.f32.mrb[0].mxu0
  %361 = vmatprep.mubr.bf16.mxu0 0
  %362 = vmatmul.mubr.bf16.gmra.mrb[0].mxu0 %v222
  %v363 = vpop.f32.mrb[0].mxu0
  %v364 = vadd.f32 %v247, %v363
  %v365 = vpop.f32.mrb[0].mxu0
  %v366 = vpop.f32.mrb[0].mxu0
  %v367 = vadd.f32 %v247, %v366
  %v368 = vpop.f32.mrb[0].mxu0
  %369 = vmatprep.mubr.bf16.mxu0 0
  %370 = vmatmul.mubr.bf16.gmra.mrb[0].mxu0 %v223
  %v371 = vpop.f32.mrb[0].mxu0
  %v372 = vadd.f32 %v247, %v371
  %v373 = vpop.f32.mrb[0].mxu0
  %v374 = vpop.f32.mrb[0].mxu0
  %v375 = vadd.f32 %v247, %v374
  %v376 = vpop.f32.mrb[0].mxu0
  %377 = vmatprep.mubr.bf16.mxu0 0
  %378 = vmatmul.mubr.bf16.gmra.mrb[0].mxu0 %v224
  %v379 = vpop.f32.mrb[0].mxu0
  %v380 = vadd.f32 %v247, %v379
  %v381 = vpop.f32.mrb[0].mxu0
  %v382 = vpop.f32.mrb[0].mxu0
  %v383 = vadd.f32 %v247, %v382
  %v384 = vpop.f32.mrb[0].mxu0
  %385 = vmatprep.mubr.bf16.mxu0 0
  %386 = vmatmul.mubr.bf16.gmra.mrb[0].mxu0 %v225
  %v387 = vpop.f32.mrb[0].mxu0
  %v388 = vadd.f32 %v247, %v387
  %v389 = vpop.f32.mrb[0].mxu0
  %v390 = vpop.f32.mrb[0].mxu0
  %v391 = vadd.f32 %v247, %v390
  %v392 = vpop.f32.mrb[0].mxu0
  %393 = vdwg.mxu0
  %v394 = vmax.f32 %v332, 0.0
  %v395 = vmax.f32 %v335, 0.0
  %v396 = vmax.f32 %v340, 0.0
  %v397 = vmax.f32 %v343, 0.0
  %v398 = vmax.f32 %v348, 0.0
  %v399 = vmax.f32 %v351, 0.0
  %v400 = vmax.f32 %v356, 0.0
  %v401 = vmax.f32 %v359, 0.0
  %v402 = vmax.f32 %v364, 0.0
  %v403 = vmax.f32 %v367, 0.0
  %v404 = vmax.f32 %v372, 0.0
  %v405 = vmax.f32 %v375, 0.0
  %v406 = vmax.f32 %v380, 0.0
  %v407 = vmax.f32 %v383, 0.0
  %v408 = vmax.f32 %v388, 0.0
  %v409 = vmax.f32 %v391, 0.0
  %v410 = vpack.c.bf16 %v395, %v394
  %v411 = vpack.c.bf16 %v397, %v396
  %v412 = vpack.c.bf16 %v399, %v398
  %v413 = vpack.c.bf16 %v401, %v400
  %v414 = vpack.c.bf16 %v403, %v402
  %v415 = vpack.c.bf16 %v405, %v404
  %v416 = vpack.c.bf16 %v407, %v406
  %v417 = vpack.c.bf16 %v409, %v408
  %v418 = vld [vmem:[%s5] sm:$0xf]
  %v419 = vld [vmem:[%s5 + $0x4] sm:$0xf]
  %v420 = vld [vmem:[%s5 + $0x8] sm:$0xf]
  %v421 = vld [vmem:[%s5 + $0xc] sm:$0xf]
  %v422 = vld [vmem:[%s5 + $0x10] sm:$0xf]
  %v423 = vld [vmem:[%s5 + $0x14] sm:$0xf]
  %v424 = vld [vmem:[%s5 + $0x18] sm:$0xf]
  %v425 = vld [vmem:[%s5 + $0x1c] sm:$0xf]
  %v426 = vld [vmem:[%s6] sm:$0x1]
  %v428 = vlaneseq
  %v429 = vshrl.u32 %v428, 7
  %v430 = vsub.s32 0, %v429
  %v431 = vrot.slane %v426, %v430
  %v441 = vunpack.c.l.b16 %v418
  %v442 = vunpack.c.l.b16 %v419
  %v443 = vunpack.c.l.b16 %v420
  %v444 = vunpack.c.l.b16 %v421
  %v445 = vunpack.c.l.b16 %v422
  %v446 = vunpack.c.l.b16 %v423
  %v447 = vunpack.c.l.b16 %v424
  %v448 = vunpack.c.l.b16 %v425
  %v449 = vpack.c.b16 %v442, %v441
  %v450 = vpack.c.b16 %v444, %v443
  %v451 = vpack.c.b16 %v446, %v445
  %v452 = vpack.c.b16 %v448, %v447
  %vm457 = vcmask 523264
  %v459 = vsel %vm457, %v410, 0
  %v462 = vsel %vm457, %v411, 0
  %v465 = vsel %vm457, %v412, 0
  %v468 = vsel %vm457, %v413, 0
  %v471 = vsel %vm457, %v414, 0
  %v474 = vsel %vm457, %v415, 0
  %v477 = vsel %vm457, %v416, 0
  %v480 = vsel %vm457, %v417, 0
  %482 = vmatprep.subr.bf16.mxu0 0
  %483 = vmatpush1.bf16.msra.mxu0 %v449
  %484 = vmatprep.subr.bf16.mxu0 0
  %485 = vmatpush1.bf16.msra.mxu0 %v450
  %486 = vmatprep.subr.bf16.mxu0 0
  %487 = vmatpush1.bf16.msra.mxu0 %v451
  %488 = vmatprep.subr.bf16.mxu0 0
  %489 = vmatpush1.bf16.msra.mxu0 %v452
  %490 = vmatprep.subr.bf16.mxu0 0
  %491 = vmatpush1.bf16.msra.mxu0 0
  %492 = vmatprep.subr.bf16.mxu0 0
  %493 = vmatpush1.bf16.msra.mxu0 0
  %494 = vmatprep.subr.bf16.mxu0 0
  %495 = vmatpush1.bf16.msra.mxu0 0
  %496 = vmatprep.subr.bf16.mxu0 0
  %497 = vmatpush1.bf16.msra.mxu0 0
  %498 = vmatprep.subr.bf16.mxu0 0
  %499 = vmatpush1.bf16.msra.mxu0 0
  %500 = vmatprep.subr.bf16.mxu0 0
  %501 = vmatpush1.bf16.msra.mxu0 0
  %502 = vmatprep.subr.bf16.mxu0 0
  %503 = vmatpush1.bf16.msra.mxu0 0
  %504 = vmatprep.subr.bf16.mxu0 0
  %505 = vmatpush1.bf16.msra.mxu0 0
  %506 = vmatprep.subr.bf16.mxu0 0
  %507 = vmatpush1.bf16.msra.mxu0 0
  %508 = vmatprep.subr.bf16.mxu0 0
  %509 = vmatpush1.bf16.msra.mxu0 0
  %510 = vmatprep.subr.bf16.mxu0 0
  %511 = vmatpush1.bf16.msra.mxu0 0
  %512 = vmatprep.subr.bf16.mxu0 0
  %513 = vmatpush1.bf16.msra.mxu0 0
  %514 = vmatprep.mubr.bf16.mxu0 0
  %515 = vmatmul.mubr.bf16.gmra.mrb[0].mxu0 %v459
  %v516 = vpop.f32.mrb[0].mxu0
  %v517 = vadd.f32 %v431, %v516
  %v518 = vpop.f32.mrb[0].mxu0
  %v519 = vpop.f32.mrb[0].mxu0
  %v520 = vadd.f32 %v431, %v519
  %v521 = vpop.f32.mrb[0].mxu0
  %522 = vmatprep.mubr.bf16.mxu0 0
  %523 = vmatmul.mubr.bf16.gmra.mrb[0].mxu0 %v462
  %v524 = vpop.f32.mrb[0].mxu0
  %v525 = vadd.f32 %v431, %v524
  %v526 = vpop.f32.mrb[0].mxu0
  %v527 = vpop.f32.mrb[0].mxu0
  %v528 = vadd.f32 %v431, %v527
  %v529 = vpop.f32.mrb[0].mxu0
  %530 = vmatprep.mubr.bf16.mxu0 0
  %531 = vmatmul.mubr.bf16.gmra.mrb[0].mxu0 %v465
  %v532 = vpop.f32.mrb[0].mxu0
  %v533 = vadd.f32 %v431, %v532
  %v534 = vpop.f32.mrb[0].mxu0
  %v535 = vpop.f32.mrb[0].mxu0
  %v536 = vadd.f32 %v431, %v535
  %v537 = vpop.f32.mrb[0].mxu0
  %538 = vmatprep.mubr.bf16.mxu0 0
  %539 = vmatmul.mubr.bf16.gmra.mrb[0].mxu0 %v468
  %v540 = vpop.f32.mrb[0].mxu0
  %v541 = vadd.f32 %v431, %v540
  %v542 = vpop.f32.mrb[0].mxu0
  %v543 = vpop.f32.mrb[0].mxu0
  %v544 = vadd.f32 %v431, %v543
  %v545 = vpop.f32.mrb[0].mxu0
  %546 = vmatprep.mubr.bf16.mxu0 0
  %547 = vmatmul.mubr.bf16.gmra.mrb[0].mxu0 %v471
  %v548 = vpop.f32.mrb[0].mxu0
  %v549 = vadd.f32 %v431, %v548
  %v550 = vpop.f32.mrb[0].mxu0
  %v551 = vpop.f32.mrb[0].mxu0
  %v552 = vadd.f32 %v431, %v551
  %v553 = vpop.f32.mrb[0].mxu0
  %554 = vmatprep.mubr.bf16.mxu0 0
  %555 = vmatmul.mubr.bf16.gmra.mrb[0].mxu0 %v474
  %v556 = vpop.f32.mrb[0].mxu0
  %v557 = vadd.f32 %v431, %v556
  %v558 = vpop.f32.mrb[0].mxu0
  %v559 = vpop.f32.mrb[0].mxu0
  %v560 = vadd.f32 %v431, %v559
  %v561 = vpop.f32.mrb[0].mxu0
  %562 = vmatprep.mubr.bf16.mxu0 0
  %563 = vmatmul.mubr.bf16.gmra.mrb[0].mxu0 %v477
  %v564 = vpop.f32.mrb[0].mxu0
  %v565 = vadd.f32 %v431, %v564
  %v566 = vpop.f32.mrb[0].mxu0
  %v567 = vpop.f32.mrb[0].mxu0
  %v568 = vadd.f32 %v431, %v567
  %v569 = vpop.f32.mrb[0].mxu0
  %570 = vmatprep.mubr.bf16.mxu0 0
  %571 = vmatmul.mubr.bf16.gmra.mrb[0].mxu0 %v480
  %v572 = vpop.f32.mrb[0].mxu0
  %v573 = vadd.f32 %v431, %v572
  %v574 = vpop.f32.mrb[0].mxu0
  %v575 = vpop.f32.mrb[0].mxu0
  %v576 = vadd.f32 %v431, %v575
  %v577 = vpop.f32.mrb[0].mxu0
  %578 = vdwg.mxu0
  %v579 = vmax.f32 %v517, 0.0
  %v580 = vmax.f32 %v520, 0.0
  %v581 = vmax.f32 %v525, 0.0
  %v582 = vmax.f32 %v528, 0.0
  %v583 = vmax.f32 %v533, 0.0
  %v584 = vmax.f32 %v536, 0.0
  %v585 = vmax.f32 %v541, 0.0
  %v586 = vmax.f32 %v544, 0.0
  %v587 = vmax.f32 %v549, 0.0
  %v588 = vmax.f32 %v552, 0.0
  %v589 = vmax.f32 %v557, 0.0
  %v590 = vmax.f32 %v560, 0.0
  %v591 = vmax.f32 %v565, 0.0
  %v592 = vmax.f32 %v568, 0.0
  %v593 = vmax.f32 %v573, 0.0
  %v594 = vmax.f32 %v576, 0.0
  %v595 = vpack.c.bf16 %v580, %v579
  %v596 = vpack.c.bf16 %v582, %v581
  %v597 = vpack.c.bf16 %v584, %v583
  %v598 = vpack.c.bf16 %v586, %v585
  %v599 = vpack.c.bf16 %v588, %v587
  %v600 = vpack.c.bf16 %v590, %v589
  %v601 = vpack.c.bf16 %v592, %v591
  %v602 = vpack.c.bf16 %v594, %v593
  %v603 = vld [vmem:[%s7] sm:$0xf]
  %v604 = vld [vmem:[%s7 + $0x4] sm:$0xf]
  %v605 = vld [vmem:[%s7 + $0x8] sm:$0xf]
  %v606 = vld [vmem:[%s7 + $0xc] sm:$0xf]
  %v607 = vld [vmem:[%s8] sm:$0x1]
  %v609 = vlaneseq
  %v610 = vshrl.u32 %v609, 7
  %v611 = vsub.s32 0, %v610
  %v612 = vrot.slane %v607, %v611
  %v618 = vunpack.c.l.b16 %v603
  %v619 = vunpack.c.l.b16 %v604
  %v620 = vunpack.c.l.b16 %v605
  %v621 = vunpack.c.l.b16 %v606
  %v622 = vpack.c.b16 %v619, %v618
  %v623 = vpack.c.b16 %v621, %v620
  %v627 = vsel %vm80, %v595, 0
  %v630 = vsel %vm80, %v596, 0
  %v633 = vsel %vm80, %v597, 0
  %v636 = vsel %vm80, %v598, 0
  %v639 = vsel %vm80, %v599, 0
  %v642 = vsel %vm80, %v600, 0
  %v645 = vsel %vm80, %v601, 0
  %v648 = vsel %vm80, %v602, 0
  %650 = vmatprep.subr.bf16.mxu0 0
  %651 = vmatpush1.bf16.msra.mxu0 %v622
  %652 = vmatprep.subr.bf16.mxu0 0
  %653 = vmatpush1.bf16.msra.mxu0 %v623
  %654 = vmatprep.subr.bf16.mxu0 0
  %655 = vmatpush1.bf16.msra.mxu0 0
  %656 = vmatprep.subr.bf16.mxu0 0
  %657 = vmatpush1.bf16.msra.mxu0 0
  %658 = vmatprep.subr.bf16.mxu0 0
  %659 = vmatpush1.bf16.msra.mxu0 0
  %660 = vmatprep.subr.bf16.mxu0 0
  %661 = vmatpush1.bf16.msra.mxu0 0
  %662 = vmatprep.subr.bf16.mxu0 0
  %663 = vmatpush1.bf16.msra.mxu0 0
  %664 = vmatprep.subr.bf16.mxu0 0
  %665 = vmatpush1.bf16.msra.mxu0 0
  %666 = vmatprep.subr.bf16.mxu0 0
  %667 = vmatpush1.bf16.msra.mxu0 0
  %668 = vmatprep.subr.bf16.mxu0 0
  %669 = vmatpush1.bf16.msra.mxu0 0
  %670 = vmatprep.subr.bf16.mxu0 0
  %671 = vmatpush1.bf16.msra.mxu0 0
  %672 = vmatprep.subr.bf16.mxu0 0
  %673 = vmatpush1.bf16.msra.mxu0 0
  %674 = vmatprep.subr.bf16.mxu0 0
  %675 = vmatpush1.bf16.msra.mxu0 0
  %676 = vmatprep.subr.bf16.mxu0 0
  %677 = vmatpush1.bf16.msra.mxu0 0
  %678 = vmatprep.subr.bf16.mxu0 0
  %679 = vmatpush1.bf16.msra.mxu0 0
  %680 = vmatprep.subr.bf16.mxu0 0
  %681 = vmatpush1.bf16.msra.mxu0 0
  %682 = vmatprep.mubr.bf16.mxu0 0
  %683 = vmatmul.mubr.bf16.gmra.mrb[0].mxu0 %v627
  %v684 = vpop.f32.mrb[0].mxu0
  %v685 = vadd.f32 %v612, %v684
  %v686 = vpop.f32.mrb[0].mxu0
  %v687 = vpop.f32.mrb[0].mxu0
  %v688 = vadd.f32 %v612, %v687
  %v689 = vpop.f32.mrb[0].mxu0
  %690 = vmatprep.mubr.bf16.mxu0 0
  %691 = vmatmul.mubr.bf16.gmra.mrb[0].mxu0 %v630
  %v692 = vpop.f32.mrb[0].mxu0
  %v693 = vadd.f32 %v612, %v692
  %v694 = vpop.f32.mrb[0].mxu0
  %v695 = vpop.f32.mrb[0].mxu0
  %v696 = vadd.f32 %v612, %v695
  %v697 = vpop.f32.mrb[0].mxu0
  %698 = vmatprep.mubr.bf16.mxu0 0
  %699 = vmatmul.mubr.bf16.gmra.mrb[0].mxu0 %v633
  %v700 = vpop.f32.mrb[0].mxu0
  %v701 = vadd.f32 %v612, %v700
  %v702 = vpop.f32.mrb[0].mxu0
  %v703 = vpop.f32.mrb[0].mxu0
  %v704 = vadd.f32 %v612, %v703
  %v705 = vpop.f32.mrb[0].mxu0
  %706 = vmatprep.mubr.bf16.mxu0 0
  %707 = vmatmul.mubr.bf16.gmra.mrb[0].mxu0 %v636
  %v708 = vpop.f32.mrb[0].mxu0
  %v709 = vadd.f32 %v612, %v708
  %v710 = vpop.f32.mrb[0].mxu0
  %v711 = vpop.f32.mrb[0].mxu0
  %v712 = vadd.f32 %v612, %v711
  %v713 = vpop.f32.mrb[0].mxu0
  %714 = vmatprep.mubr.bf16.mxu0 0
  %715 = vmatmul.mubr.bf16.gmra.mrb[0].mxu0 %v639
  %v716 = vpop.f32.mrb[0].mxu0
  %v717 = vadd.f32 %v612, %v716
  %v718 = vpop.f32.mrb[0].mxu0
  %v719 = vpop.f32.mrb[0].mxu0
  %v720 = vadd.f32 %v612, %v719
  %v721 = vpop.f32.mrb[0].mxu0
  %722 = vmatprep.mubr.bf16.mxu0 0
  %723 = vmatmul.mubr.bf16.gmra.mrb[0].mxu0 %v642
  %v724 = vpop.f32.mrb[0].mxu0
  %v725 = vadd.f32 %v612, %v724
  %v726 = vpop.f32.mrb[0].mxu0
  %v727 = vpop.f32.mrb[0].mxu0
  %v728 = vadd.f32 %v612, %v727
  %v729 = vpop.f32.mrb[0].mxu0
  %730 = vmatprep.mubr.bf16.mxu0 0
  %731 = vmatmul.mubr.bf16.gmra.mrb[0].mxu0 %v645
  %v732 = vpop.f32.mrb[0].mxu0
  %v733 = vadd.f32 %v612, %v732
  %v734 = vpop.f32.mrb[0].mxu0
  %v735 = vpop.f32.mrb[0].mxu0
  %v736 = vadd.f32 %v612, %v735
  %v737 = vpop.f32.mrb[0].mxu0
  %738 = vmatprep.mubr.bf16.mxu0 0
  %739 = vmatmul.mubr.bf16.gmra.mrb[0].mxu0 %v648
  %v740 = vpop.f32.mrb[0].mxu0
  %v741 = vadd.f32 %v612, %v740
  %v742 = vpop.f32.mrb[0].mxu0
  %v743 = vpop.f32.mrb[0].mxu0
  %v744 = vadd.f32 %v612, %v743
  %v745 = vpop.f32.mrb[0].mxu0
  %746 = vdwg.mxu0
  %vm747 = vcmask 64512
  %v748 = vsel %vm747, %v685, -inf
  %749 = vmax.xlane.f32.xlu0 %v748
  %v750 = vpop.xlane.xlu0 %749
  %v751 = vsel %vm747, %v688, -inf
  %752 = vmax.xlane.f32.xlu0 %v751
  %v753 = vpop.xlane.xlu0 %752
  %v754 = vsel %vm747, %v693, -inf
  %755 = vmax.xlane.f32.xlu0 %v754
  %v756 = vpop.xlane.xlu0 %755
  %v757 = vsel %vm747, %v696, -inf
  %758 = vmax.xlane.f32.xlu0 %v757
  %v759 = vpop.xlane.xlu0 %758
  %v760 = vsel %vm747, %v701, -inf
  %761 = vmax.xlane.f32.xlu0 %v760
  %v762 = vpop.xlane.xlu0 %761
  %v763 = vsel %vm747, %v704, -inf
  %764 = vmax.xlane.f32.xlu0 %v763
  %v765 = vpop.xlane.xlu0 %764
  %v766 = vsel %vm747, %v709, -inf
  %767 = vmax.xlane.f32.xlu0 %v766
  %v768 = vpop.xlane.xlu0 %767
  %v769 = vsel %vm747, %v712, -inf
  %770 = vmax.xlane.f32.xlu0 %v769
  %v771 = vpop.xlane.xlu0 %770
  %v772 = vsel %vm747, %v717, -inf
  %773 = vmax.xlane.f32.xlu0 %v772
  %v774 = vpop.xlane.xlu0 %773
  %v775 = vsel %vm747, %v720, -inf
  %776 = vmax.xlane.f32.xlu0 %v775
  %v777 = vpop.xlane.xlu0 %776
  %v778 = vsel %vm747, %v725, -inf
  %779 = vmax.xlane.f32.xlu0 %v778
  %v780 = vpop.xlane.xlu0 %779
  %v781 = vsel %vm747, %v728, -inf
  %782 = vmax.xlane.f32.xlu0 %v781
  %v783 = vpop.xlane.xlu0 %782
  %v784 = vsel %vm747, %v733, -inf
  %785 = vmax.xlane.f32.xlu0 %v784
  %v786 = vpop.xlane.xlu0 %785
  %v787 = vsel %vm747, %v736, -inf
  %788 = vmax.xlane.f32.xlu0 %v787
  %v789 = vpop.xlane.xlu0 %788
  %v790 = vsel %vm747, %v741, -inf
  %791 = vmax.xlane.f32.xlu0 %v790
  %v792 = vpop.xlane.xlu0 %791
  %v793 = vsel %vm747, %v744, -inf
  %794 = vmax.xlane.f32.xlu0 %v793
  %v795 = vpop.xlane.xlu0 %794
  %v796 = vsub.f32 %v685, %v750
  %v797 = vsub.f32 %v688, %v753
  %v798 = vsub.f32 %v693, %v756
  %v799 = vsub.f32 %v696, %v759
  %v800 = vsub.f32 %v701, %v762
  %v801 = vsub.f32 %v704, %v765
  %v802 = vsub.f32 %v709, %v768
  %v803 = vsub.f32 %v712, %v771
  %v804 = vsub.f32 %v717, %v774
  %v805 = vsub.f32 %v720, %v777
  %v806 = vsub.f32 %v725, %v780
  %v807 = vsub.f32 %v728, %v783
  %v808 = vsub.f32 %v733, %v786
  %v809 = vsub.f32 %v736, %v789
  %v810 = vsub.f32 %v741, %v792
  %v811 = vsub.f32 %v744, %v795
  %v812 = vmul.f32 %v796, 1.442695
  %v813 = vpow.pop %v812
  %v814 = vmul.f32 %v797, 1.442695
  %v815 = vpow.pop %v814
  %v816 = vmul.f32 %v798, 1.442695
  %v817 = vpow.pop %v816
  %v818 = vmul.f32 %v799, 1.442695
  %v819 = vpow.pop %v818
  %v820 = vmul.f32 %v800, 1.442695
  %v821 = vpow.pop %v820
  %v822 = vmul.f32 %v801, 1.442695
  %v823 = vpow.pop %v822
  %v824 = vmul.f32 %v802, 1.442695
  %v825 = vpow.pop %v824
  %v826 = vmul.f32 %v803, 1.442695
  %v827 = vpow.pop %v826
  %v828 = vmul.f32 %v804, 1.442695
  %v829 = vpow.pop %v828
  %v830 = vmul.f32 %v805, 1.442695
  %v831 = vpow.pop %v830
  %v832 = vmul.f32 %v806, 1.442695
  %v833 = vpow.pop %v832
  %v834 = vmul.f32 %v807, 1.442695
  %v835 = vpow.pop %v834
  %v836 = vmul.f32 %v808, 1.442695
  %v837 = vpow.pop %v836
  %v838 = vmul.f32 %v809, 1.442695
  %v839 = vpow.pop %v838
  %v840 = vmul.f32 %v810, 1.442695
  %v841 = vpow.pop %v840
  %v842 = vmul.f32 %v811, 1.442695
  %v843 = vpow.pop %v842
  %v844 = vsel %vm747, %v813, 0.0
  %845 = vadd.xlane.f32.xlu0 %v844
  %v846 = vpop.xlane.xlu0 %845
  %v847 = vsel %vm747, %v815, 0.0
  %848 = vadd.xlane.f32.xlu0 %v847
  %v849 = vpop.xlane.xlu0 %848
  %v850 = vsel %vm747, %v817, 0.0
  %851 = vadd.xlane.f32.xlu0 %v850
  %v852 = vpop.xlane.xlu0 %851
  %v853 = vsel %vm747, %v819, 0.0
  %854 = vadd.xlane.f32.xlu0 %v853
  %v855 = vpop.xlane.xlu0 %854
  %v856 = vsel %vm747, %v821, 0.0
  %857 = vadd.xlane.f32.xlu0 %v856
  %v858 = vpop.xlane.xlu0 %857
  %v859 = vsel %vm747, %v823, 0.0
  %860 = vadd.xlane.f32.xlu0 %v859
  %v861 = vpop.xlane.xlu0 %860
  %v862 = vsel %vm747, %v825, 0.0
  %863 = vadd.xlane.f32.xlu0 %v862
  %v864 = vpop.xlane.xlu0 %863
  %v865 = vsel %vm747, %v827, 0.0
  %866 = vadd.xlane.f32.xlu0 %v865
  %v867 = vpop.xlane.xlu0 %866
  %v868 = vsel %vm747, %v829, 0.0
  %869 = vadd.xlane.f32.xlu0 %v868
  %v870 = vpop.xlane.xlu0 %869
  %v871 = vsel %vm747, %v831, 0.0
  %872 = vadd.xlane.f32.xlu0 %v871
  %v873 = vpop.xlane.xlu0 %872
  %v874 = vsel %vm747, %v833, 0.0
  %875 = vadd.xlane.f32.xlu0 %v874
  %v876 = vpop.xlane.xlu0 %875
  %v877 = vsel %vm747, %v835, 0.0
  %878 = vadd.xlane.f32.xlu0 %v877
  %v879 = vpop.xlane.xlu0 %878
  %v880 = vsel %vm747, %v837, 0.0
  %881 = vadd.xlane.f32.xlu0 %v880
  %v882 = vpop.xlane.xlu0 %881
  %v883 = vsel %vm747, %v839, 0.0
  %884 = vadd.xlane.f32.xlu0 %v883
  %v885 = vpop.xlane.xlu0 %884
  %v886 = vsel %vm747, %v841, 0.0
  %887 = vadd.xlane.f32.xlu0 %v886
  %v888 = vpop.xlane.xlu0 %887
  %v889 = vsel %vm747, %v843, 0.0
  %890 = vadd.xlane.f32.xlu0 %v889
  %v891 = vpop.xlane.xlu0 %890
  %v892 = vrcp.pop %v846
  %v893 = vmul.f32 %v813, %v892
  %v894 = vrcp.pop %v849
  %v895 = vmul.f32 %v815, %v894
  %v896 = vrcp.pop %v852
  %v897 = vmul.f32 %v817, %v896
  %v898 = vrcp.pop %v855
  %v899 = vmul.f32 %v819, %v898
  %v900 = vrcp.pop %v858
  %v901 = vmul.f32 %v821, %v900
  %v902 = vrcp.pop %v861
  %v903 = vmul.f32 %v823, %v902
  %v904 = vrcp.pop %v864
  %v905 = vmul.f32 %v825, %v904
  %v906 = vrcp.pop %v867
  %v907 = vmul.f32 %v827, %v906
  %v908 = vrcp.pop %v870
  %v909 = vmul.f32 %v829, %v908
  %v910 = vrcp.pop %v873
  %v911 = vmul.f32 %v831, %v910
  %v912 = vrcp.pop %v876
  %v913 = vmul.f32 %v833, %v912
  %v914 = vrcp.pop %v879
  %v915 = vmul.f32 %v835, %v914
  %v916 = vrcp.pop %v882
  %v917 = vmul.f32 %v837, %v916
  %v918 = vrcp.pop %v885
  %v919 = vmul.f32 %v839, %v918
  %v920 = vrcp.pop %v888
  %v921 = vmul.f32 %v841, %v920
  %v922 = vrcp.pop %v891
  %v923 = vmul.f32 %v843, %v922
  %924 = vst.msk [vmem:[%s9] sm:$0xff] %vm747, %v893
  %925 = vst.msk [vmem:[%s9 + $0x8] sm:$0xff] %vm747, %v895
  %926 = vst.msk [vmem:[%s9 + $0x10] sm:$0xff] %vm747, %v897
  %927 = vst.msk [vmem:[%s9 + $0x18] sm:$0xff] %vm747, %v899
  %928 = vst.msk [vmem:[%s9 + $0x20] sm:$0xff] %vm747, %v901
  %929 = vst.msk [vmem:[%s9 + $0x28] sm:$0xff] %vm747, %v903
  %930 = vst.msk [vmem:[%s9 + $0x30] sm:$0xff] %vm747, %v905
  %931 = vst.msk [vmem:[%s9 + $0x38] sm:$0xff] %vm747, %v907
  %932 = vst.msk [vmem:[%s9 + $0x40] sm:$0xff] %vm747, %v909
  %933 = vst.msk [vmem:[%s9 + $0x48] sm:$0xff] %vm747, %v911
  %934 = vst.msk [vmem:[%s9 + $0x50] sm:$0xff] %vm747, %v913
  %935 = vst.msk [vmem:[%s9 + $0x58] sm:$0xff] %vm747, %v915
  %936 = vst.msk [vmem:[%s9 + $0x60] sm:$0xff] %vm747, %v917
  %937 = vst.msk [vmem:[%s9 + $0x68] sm:$0xff] %vm747, %v919
  %938 = vst.msk [vmem:[%s9 + $0x70] sm:$0xff] %vm747, %v921
  %939 = vst.msk [vmem:[%s9 + $0x78] sm:$0xff] %vm747, %v923
  // Predicated region
  $region38: #{_actor_forward.1} parent=0 // pred_check
    _
  $region39: #{_actor_forward.1} parent=0 // pred_check_branch
    %941 = sbr.rel (0) target = $region41
  $region40: #{_actor_forward.1} parent=0 // pred_region
    _
  $region41: #{_actor_forward.1} parent=0 // pred_fallthru
    _
  // Predicated region
  $region42: #{_actor_forward.1} parent=0 // pred_check
    _
  $region43: #{_actor_forward.1} parent=0 // pred_check_branch
    %943 = sbr.rel (0) target = $region45
  $region44: #{_actor_forward.1} parent=0 // pred_region
    _
  $region45: #{_actor_forward.1} parent=0 // pred_fallthru
    _

</llo_original>
